<compile_context>
chip_gen: v7x
topology: tpu7x:2x2x1
jax: 0.10.0
libtpu: 0.0.40
codegen_flags: <defaults>
</compile_context>

<pallas_src>
import functools

import jax
import jax.numpy as jnp
from jax.experimental import pallas as pl
from jax.experimental.pallas import tpu as pltpu

LN_EPS = 1e-12  # espnet LayerNorm default


def _round_up(v, m):
    return (v + m - 1) // m * m


def _choose_tm(n_tok):
    """Token-tile rows: prefer full MXU passes but keep >= 2 grid steps."""
    if n_tok >= 512:
        return 256
    if n_tok >= 256:
        return 128
    return max(8, _round_up(n_tok, 8))  # tiny inputs: one sublane-aligned tile


def _ffn_kernel(x_ref, w1_ref, b1_ref, g_ref, beta_ref, w2_ref, o_ref, *,
                inv_hidden):
    """One (tm, idim_p) token tile -> (tm, odim_p) output tile.

    Feature dims are zero-padded to lane multiples (128) by the wrapper.
    b1/gamma/beta are zero-padded too, so the padded hidden columns of `h`
    are exactly 0 and fall out of the LayerNorm statistics, which are
    computed with the *real* hidden width (inv_hidden = 1 / hidden_real).
    """
    # --- w_1 (MXU, f32 accumulate) + bias + ReLU --------------------------
    h = jnp.dot(x_ref[...], w1_ref[...], preferred_element_type=jnp.float32)
    h = jnp.maximum(h + b1_ref[...].astype(jnp.float32), 0.0)

    # --- LayerNorm over the real hidden width (f32) -----------------------
    # One-pass moments: padded columns of h are exactly zero, so the sums
    # over the padded width equal the sums over the real width.
    s1 = jnp.sum(h, axis=-1, keepdims=True)
    s2 = jnp.sum(h * h, axis=-1, keepdims=True)
    mean = s1 * inv_hidden
    var = jnp.maximum(s2 * inv_hidden - mean * mean, 0.0)
    # rsqrt goes to the EUP slot; fold gamma into the scale to save one full
    # (tm, hidden) VPU pass.
    scale = jax.lax.rsqrt(var + LN_EPS) * g_ref[...].astype(jnp.float32)
    hn = (h - mean) * scale + beta_ref[...].astype(jnp.float32)

    # --- w_2 (no bias); feed the MXU in w2's storage dtype ----------------
    out = jnp.dot(hn.astype(w2_ref.dtype), w2_ref[...],
                  preferred_element_type=jnp.float32)
    o_ref[...] = out.astype(o_ref.dtype)


def ffn_decoder_sanm(x, w1, b1, gamma, beta, w2, *, tm=None):
    """x: (B, T, idim); w1: (idim, hidden); b1/gamma/beta: (hidden,);
    w2: (hidden, odim).  Weights are stored (in_features, out_features),
    i.e. transposed relative to PyTorch.  Returns (B, T, odim)."""
    B, T, idim = x.shape
    hidden = w1.shape[1]
    odim = w2.shape[1]
    n_tok = B * T

    # Lane-dense padding of the feature dims (multiples of 128).
    idim_p = _round_up(idim, 128)
    hid_p = _round_up(hidden, 128)
    odim_p = _round_up(odim, 128)

    if tm is None:
        tm = _choose_tm(n_tok)
    n_tok_p = _round_up(n_tok, tm)

    # Zero-pad operands (no-ops when already aligned).
    x2 = jnp.pad(x.reshape(n_tok, idim),
                 ((0, n_tok_p - n_tok), (0, idim_p - idim)))
    w1p = jnp.pad(w1, ((0, idim_p - idim), (0, hid_p - hidden)))
    b1p = jnp.pad(b1, (0, hid_p - hidden)).reshape(1, hid_p)
    gp = jnp.pad(gamma, (0, hid_p - hidden)).reshape(1, hid_p)
    bp = jnp.pad(beta, (0, hid_p - hidden)).reshape(1, hid_p)
    w2p = jnp.pad(w2, ((0, hid_p - hidden), (0, odim_p - odim)))

    # Explicit VMEM budget (keeps large tiles legal on v7x's 64 MiB core).
    xb = jnp.dtype(x.dtype).itemsize
    wb = jnp.dtype(w1.dtype).itemsize
    est = (2 * tm * (idim_p + odim_p) * xb                      # streamed x/out
           + 2 * (idim_p * hid_p + hid_p * odim_p + 3 * hid_p) * wb  # residents
           + 2 * tm * hid_p * 4)                                # f32 intermediate
    vmem_limit = int(min(max(2 * est, 16 << 20), 48 << 20))

    kernel = functools.partial(_ffn_kernel, inv_hidden=1.0 / hidden)
    x_spec = pl.BlockSpec((tm, idim_p), lambda i: (i, 0))
    o_spec = pl.BlockSpec((tm, odim_p), lambda i: (i, 0))

    def _const_specs(single_buffer):
        kw = dict(pipeline_mode=pl.Buffered(1)) if single_buffer else {}
        return [
            pl.BlockSpec((idim_p, hid_p), lambda i: (0, 0), **kw),
            pl.BlockSpec((1, hid_p), lambda i: (0, 0), **kw),
            pl.BlockSpec((1, hid_p), lambda i: (0, 0), **kw),
            pl.BlockSpec((1, hid_p), lambda i: (0, 0), **kw),
            pl.BlockSpec((hid_p, odim_p), lambda i: (0, 0), **kw),
        ]

    def _call(const_specs):
        return pl.pallas_call(
            kernel,
            out_shape=jax.ShapeDtypeStruct((n_tok_p, odim_p), x.dtype),
            grid_spec=pltpu.PrefetchScalarGridSpec(
                num_scalar_prefetch=0,
                grid=(n_tok_p // tm,),
                in_specs=[x_spec] + const_specs,
                out_specs=o_spec,
            ),
            compiler_params=pltpu.CompilerParams(
                dimension_semantics=("parallel",),
                vmem_limit_bytes=vmem_limit,
            ),
        )(x2, w1p, b1p, gp, bp, w2p)

    try:
        # Resident operands single-buffered; only x/out tiles double-buffered.
        out = _call(_const_specs(single_buffer=True))
    except Exception:
        # Fallback if this JAX build rejects Buffered(1) on constant specs.
        out = _call(_const_specs(single_buffer=False))

    return out[:n_tok, :odim].reshape(B, T, odim)


def _reference(x, w1, b1, gamma, beta, w2):
    h = jnp.maximum(jnp.einsum("btd,dh->bth", x, w1) + b1, 0.0)
    mean = jnp.mean(h, axis=-1, keepdims=True)
    var = jnp.mean((h - mean) ** 2, axis=-1, keepdims=True)
    hn = (h - mean) / jnp.sqrt(var + LN_EPS) * gamma + beta
    return jnp.einsum("bth,ho->bto", hn, w2)


if __name__ == "__main__":
    # Small shapes consistent with the decoder FFN: batch=2, seq=8,
    # idim=odim=32, hidden_units=64 (adim=None in the original module).
    B, T, idim, hidden = 2, 8, 32, 64
    odim = idim

    key = jax.random.PRNGKey(0)
    kx, k1, kb, k2 = jax.random.split(key, 4)

    x = jax.random.normal(kx, (B, T, idim), dtype=jnp.float32)
    # PyTorch stores Linear weight as (out, in); here kept as (in, out) so the
    # kernel does x @ W.
    w1 = jax.random.normal(k1, (idim, hidden), dtype=jnp.float32) * 0.05
    b1 = jax.random.normal(kb, (hidden,), dtype=jnp.float32) * 0.05
    gamma = jnp.ones((hidden,), dtype=jnp.float32) * 1.1
    beta = jnp.ones((hidden,), dtype=jnp.float32) * 0.01
    w2 = jax.random.normal(k2, (hidden, odim), dtype=jnp.float32) * 0.05

    ref = _reference(x, w1, b1, gamma, beta, w2)

    # f32 path: tight tolerance vs reference.
    out = jax.block_until_ready(ffn_decoder_sanm(x, w1, b1, gamma, beta, w2))
    assert out.shape == (B, T, odim)
    assert jnp.allclose(out, ref, atol=1e-4, rtol=1e-4), "f32 mismatch vs reference"

    # bf16 matmul-operand path (LayerNorm stays f32 inside the kernel).
    out_bf16 = jax.block_until_ready(
        ffn_decoder_sanm(x.astype(jnp.bfloat16), w1.astype(jnp.bfloat16),
                         b1, gamma, beta, w2.astype(jnp.bfloat16)))
    assert out_bf16.shape == (B, T, odim)
    assert jnp.allclose(out_bf16.astype(jnp.float32), ref,
                        atol=5e-2, rtol=5e-2), "bf16 mismatch vs reference"

    print("KERNEL_OK")
</pallas_src>

<mosaic_0001>
module attributes {stable_mosaic.version = 11 : i64} {
  func.func @_ffn_kernel(%arg0: i32, %arg1: memref<16x128xf32, #tpu.memory_space<vmem>>, %arg2: memref<128x128xf32, #tpu.memory_space<vmem>>, %arg3: memref<1x128xf32, #tpu.memory_space<vmem>>, %arg4: memref<1x128xf32, #tpu.memory_space<vmem>>, %arg5: memref<1x128xf32, #tpu.memory_space<vmem>>, %arg6: memref<128x128xf32, #tpu.memory_space<vmem>>, %arg7: memref<16x128xf32, #tpu.memory_space<vmem>>) attributes {dimension_semantics = [#tpu.dimension_semantics<parallel>], iteration_bounds = array<i64: 1>, scalar_prefetch = 0 : i64, scratch_operands = 0 : i64, tpu.core_type = #tpu.core_type<tc>, window_params = [{transform_indices = @transform_0, window_bounds = array<i64: 16, 128>}, {pipeline_mode = #tpu.pipeline_mode<synchronous>, transform_indices = @transform_1, window_bounds = array<i64: 128, 128>}, {pipeline_mode = #tpu.pipeline_mode<synchronous>, transform_indices = @transform_2, window_bounds = array<i64: 1, 128>}, {pipeline_mode = #tpu.pipeline_mode<synchronous>, transform_indices = @transform_3, window_bounds = array<i64: 1, 128>}, {pipeline_mode = #tpu.pipeline_mode<synchronous>, transform_indices = @transform_4, window_bounds = array<i64: 1, 128>}, {pipeline_mode = #tpu.pipeline_mode<synchronous>, transform_indices = @transform_5, window_bounds = array<i64: 128, 128>}, {transform_indices = @transform_6, window_bounds = array<i64: 16, 128>}]} {
    %c0 = arith.constant 0 : index
    %c0_0 = arith.constant 0 : index
    %0 = vector.load %arg1[%c0, %c0_0] : memref<16x128xf32, #tpu.memory_space<vmem>>, vector<16x128xf32>
    %c0_1 = arith.constant 0 : index
    %c0_2 = arith.constant 0 : index
    %1 = vector.load %arg2[%c0_1, %c0_2] : memref<128x128xf32, #tpu.memory_space<vmem>>, vector<128x128xf32>
    %cst = arith.constant dense<0.000000e+00> : vector<16x128xf32>
    %2 = tpu.matmul %0, %1, %cst {dimension_numbers = #tpu.dot_dimension_numbers<[1], [0], [0], [1], [0, 0, 1, 1], [], []>} : vector<16x128xf32>, vector<128x128xf32>, vector<16x128xf32> -> vector<16x128xf32>
    %c0_3 = arith.constant 0 : index
    %c0_4 = arith.constant 0 : index
    %3 = vector.load %arg3[%c0_3, %c0_4] : memref<1x128xf32, #tpu.memory_space<vmem>>, vector<1x128xf32>
    %4 = vector.broadcast %3 : vector<1x128xf32> to vector<16x128xf32>
    %5 = arith.addf %2, %4 : vector<16x128xf32>
    %cst_5 = arith.constant 0.000000e+00 : f32
    %6 = vector.broadcast %cst_5 : f32 to vector<16x128xf32>
    %7 = arith.maximumf %5, %6 : vector<16x128xf32>
    %cst_6 = arith.constant dense<0.000000e+00> : vector<16xf32>
    %8 = vector.multi_reduction <add>, %7, %cst_6 [1] : vector<16x128xf32> to vector<16xf32>
    %9 = vector.shape_cast %8 : vector<16xf32> to vector<16x1xf32>
    %10 = arith.mulf %7, %7 : vector<16x128xf32>
    %cst_7 = arith.constant dense<0.000000e+00> : vector<16xf32>
    %11 = vector.multi_reduction <add>, %10, %cst_7 [1] : vector<16x128xf32> to vector<16xf32>
    %12 = vector.shape_cast %11 : vector<16xf32> to vector<16x1xf32>
    %cst_8 = arith.constant 1.562500e-02 : f32
    %13 = vector.broadcast %cst_8 : f32 to vector<16x1xf32>
    %14 = arith.mulf %9, %13 : vector<16x1xf32>
    %cst_9 = arith.constant 1.562500e-02 : f32
    %15 = vector.broadcast %cst_9 : f32 to vector<16x1xf32>
    %16 = arith.mulf %12, %15 : vector<16x1xf32>
    %17 = arith.mulf %14, %14 : vector<16x1xf32>
    %18 = arith.subf %16, %17 : vector<16x1xf32>
    %cst_10 = arith.constant 0.000000e+00 : f32
    %19 = vector.broadcast %cst_10 : f32 to vector<16x1xf32>
    %20 = arith.maximumf %18, %19 : vector<16x1xf32>
    %cst_11 = arith.constant 9.99999996E-13 : f32
    %21 = vector.broadcast %cst_11 : f32 to vector<16x1xf32>
    %22 = arith.addf %20, %21 : vector<16x1xf32>
    %23 = math.rsqrt %22 : vector<16x1xf32>
    %c0_12 = arith.constant 0 : index
    %c0_13 = arith.constant 0 : index
    %24 = vector.load %arg4[%c0_12, %c0_13] : memref<1x128xf32, #tpu.memory_space<vmem>>, vector<1x128xf32>
    %25 = vector.broadcast %23 : vector<16x1xf32> to vector<16x128xf32>
    %26 = vector.broadcast %24 : vector<1x128xf32> to vector<16x128xf32>
    %27 = arith.mulf %25, %26 : vector<16x128xf32>
    %28 = vector.broadcast %14 : vector<16x1xf32> to vector<16x128xf32>
    %29 = arith.subf %7, %28 : vector<16x128xf32>
    %30 = arith.mulf %29, %27 : vector<16x128xf32>
    %c0_14 = arith.constant 0 : index
    %c0_15 = arith.constant 0 : index
    %31 = vector.load %arg5[%c0_14, %c0_15] : memref<1x128xf32, #tpu.memory_space<vmem>>, vector<1x128xf32>
    %32 = vector.broadcast %31 : vector<1x128xf32> to vector<16x128xf32>
    %33 = arith.addf %30, %32 : vector<16x128xf32>
    %c0_16 = arith.constant 0 : index
    %c0_17 = arith.constant 0 : index
    %34 = vector.load %arg6[%c0_16, %c0_17] : memref<128x128xf32, #tpu.memory_space<vmem>>, vector<128x128xf32>
    %cst_18 = arith.constant dense<0.000000e+00> : vector<16x128xf32>
    %35 = tpu.matmul %33, %34, %cst_18 {dimension_numbers = #tpu.dot_dimension_numbers<[1], [0], [0], [1], [0, 0, 1, 1], [], []>} : vector<16x128xf32>, vector<128x128xf32>, vector<16x128xf32> -> vector<16x128xf32>
    %c0_19 = arith.constant 0 : index
    %c0_20 = arith.constant 0 : index
    %36 = vector.load %arg7[%c0_19, %c0_20] : memref<16x128xf32, #tpu.memory_space<vmem>>, vector<16x128xf32>
    tpu.vector_store %arg7[%c0_19, %c0_20], %35 {strides = array<i32>} : memref<16x128xf32, #tpu.memory_space<vmem>>, vector<16x128xf32>,
    return
  }
  func.func @transform_0(%arg0: i32) -> (i32, i32) {
    %c0_i32 = arith.constant 0 : i32
    %c0_i32_0 = arith.constant 0 : i32
    return %arg0, %c0_i32 : i32, i32
  }
  func.func @transform_1(%arg0: i32) -> (i32, i32) {
    %c0_i32 = arith.constant 0 : i32
    %c0_i32_0 = arith.constant 0 : i32
    %c0_i32_1 = arith.constant 0 : i32
    return %c0_i32, %c0_i32_0 : i32, i32
  }
  func.func @transform_2(%arg0: i32) -> (i32, i32) {
    %c0_i32 = arith.constant 0 : i32
    %c0_i32_0 = arith.constant 0 : i32
    %c0_i32_1 = arith.constant 0 : i32
    return %c0_i32, %c0_i32_0 : i32, i32
  }
  func.func @transform_3(%arg0: i32) -> (i32, i32) {
    %c0_i32 = arith.constant 0 : i32
    %c0_i32_0 = arith.constant 0 : i32
    %c0_i32_1 = arith.constant 0 : i32
    return %c0_i32, %c0_i32_0 : i32, i32
  }
  func.func @transform_4(%arg0: i32) -> (i32, i32) {
    %c0_i32 = arith.constant 0 : i32
    %c0_i32_0 = arith.constant 0 : i32
    %c0_i32_1 = arith.constant 0 : i32
    return %c0_i32, %c0_i32_0 : i32, i32
  }
  func.func @transform_5(%arg0: i32) -> (i32, i32) {
    %c0_i32 = arith.constant 0 : i32
    %c0_i32_0 = arith.constant 0 : i32
    %c0_i32_1 = arith.constant 0 : i32
    return %c0_i32, %c0_i32_0 : i32, i32
  }
  func.func @transform_6(%arg0: i32) -> (i32, i32) {
    %c0_i32 = arith.constant 0 : i32
    %c0_i32_0 = arith.constant 0 : i32
    return %arg0, %c0_i32 : i32, i32
  }
}

module attributes {stable_mosaic.version = 11 : i64} {
  func.func @_ffn_kernel(%arg0: i32, %arg1: memref<16x128xf32, #tpu.memory_space<vmem>>, %arg2: memref<128x128xf32, #tpu.memory_space<vmem>>, %arg3: memref<1x128xf32, #tpu.memory_space<vmem>>, %arg4: memref<1x128xf32, #tpu.memory_space<vmem>>, %arg5: memref<1x128xf32, #tpu.memory_space<vmem>>, %arg6: memref<128x128xf32, #tpu.memory_space<vmem>>, %arg7: memref<16x128xf32, #tpu.memory_space<vmem>>) attributes {dimension_semantics = [#tpu.dimension_semantics<parallel>], iteration_bounds = array<i64: 1>, scalar_prefetch = 0 : i64, scratch_operands = 0 : i64, tpu.core_type = #tpu.core_type<tc>, window_params = [{transform_indices = @transform_0, window_bounds = array<i64: 16, 128>}, {pipeline_mode = #tpu.pipeline_mode<synchronous>, transform_indices = @transform_1, window_bounds = array<i64: 128, 128>}, {pipeline_mode = #tpu.pipeline_mode<synchronous>, transform_indices = @transform_2, window_bounds = array<i64: 1, 128>}, {pipeline_mode = #tpu.pipeline_mode<synchronous>, transform_indices = @transform_3, window_bounds = array<i64: 1, 128>}, {pipeline_mode = #tpu.pipeline_mode<synchronous>, transform_indices = @transform_4, window_bounds = array<i64: 1, 128>}, {pipeline_mode = #tpu.pipeline_mode<synchronous>, transform_indices = @transform_5, window_bounds = array<i64: 128, 128>}, {transform_indices = @transform_6, window_bounds = array<i64: 16, 128>}]} {
    %c0 = arith.constant 0 : index
    %c0_0 = arith.constant 0 : index
    %0 = vector.load %arg1[%c0, %c0_0] : memref<16x128xf32, #tpu.memory_space<vmem>>, vector<16x128xf32>
    %c0_1 = arith.constant 0 : index
    %c0_2 = arith.constant 0 : index
    %1 = vector.load %arg2[%c0_1, %c0_2] : memref<128x128xf32, #tpu.memory_space<vmem>>, vector<128x128xf32>
    %cst = arith.constant dense<0.000000e+00> : vector<16x128xf32>
    %2 = tpu.matmul %0, %1, %cst {dimension_numbers = #tpu.dot_dimension_numbers<[1], [0], [0], [1], [0, 0, 1, 1], [], []>} : vector<16x128xf32>, vector<128x128xf32>, vector<16x128xf32> -> vector<16x128xf32>
    %c0_3 = arith.constant 0 : index
    %c0_4 = arith.constant 0 : index
    %3 = vector.load %arg3[%c0_3, %c0_4] : memref<1x128xf32, #tpu.memory_space<vmem>>, vector<1x128xf32>
    %4 = vector.broadcast %3 : vector<1x128xf32> to vector<16x128xf32>
    %5 = arith.addf %2, %4 : vector<16x128xf32>
    %cst_5 = arith.constant 0.000000e+00 : f32
    %6 = vector.broadcast %cst_5 : f32 to vector<16x128xf32>
    %7 = arith.maximumf %5, %6 : vector<16x128xf32>
    %cst_6 = arith.constant dense<0.000000e+00> : vector<16xf32>
    %8 = vector.multi_reduction <add>, %7, %cst_6 [1] : vector<16x128xf32> to vector<16xf32>
    %9 = vector.shape_cast %8 : vector<16xf32> to vector<16x1xf32>
    %10 = arith.mulf %7, %7 : vector<16x128xf32>
    %cst_7 = arith.constant dense<0.000000e+00> : vector<16xf32>
    %11 = vector.multi_reduction <add>, %10, %cst_7 [1] : vector<16x128xf32> to vector<16xf32>
    %12 = vector.shape_cast %11 : vector<16xf32> to vector<16x1xf32>
    %cst_8 = arith.constant 1.562500e-02 : f32
    %13 = vector.broadcast %cst_8 : f32 to vector<16x1xf32>
    %14 = arith.mulf %9, %13 : vector<16x1xf32>
    %cst_9 = arith.constant 1.562500e-02 : f32
    %15 = vector.broadcast %cst_9 : f32 to vector<16x1xf32>
    %16 = arith.mulf %12, %15 : vector<16x1xf32>
    %17 = arith.mulf %14, %14 : vector<16x1xf32>
    %18 = arith.subf %16, %17 : vector<16x1xf32>
    %cst_10 = arith.constant 0.000000e+00 : f32
    %19 = vector.broadcast %cst_10 : f32 to vector<16x1xf32>
    %20 = arith.maximumf %18, %19 : vector<16x1xf32>
    %cst_11 = arith.constant 9.99999996E-13 : f32
    %21 = vector.broadcast %cst_11 : f32 to vector<16x1xf32>
    %22 = arith.addf %20, %21 : vector<16x1xf32>
    %23 = math.rsqrt %22 : vector<16x1xf32>
    %c0_12 = arith.constant 0 : index
    %c0_13 = arith.constant 0 : index
    %24 = vector.load %arg4[%c0_12, %c0_13] : memref<1x128xf32, #tpu.memory_space<vmem>>, vector<1x128xf32>
    %25 = vector.broadcast %23 : vector<16x1xf32> to vector<16x128xf32>
    %26 = vector.broadcast %24 : vector<1x128xf32> to vector<16x128xf32>
    %27 = arith.mulf %25, %26 : vector<16x128xf32>
    %28 = vector.broadcast %14 : vector<16x1xf32> to vector<16x128xf32>
    %29 = arith.subf %7, %28 : vector<16x128xf32>
    %30 = arith.mulf %29, %27 : vector<16x128xf32>
    %c0_14 = arith.constant 0 : index
    %c0_15 = arith.constant 0 : index
    %31 = vector.load %arg5[%c0_14, %c0_15] : memref<1x128xf32, #tpu.memory_space<vmem>>, vector<1x128xf32>
    %32 = vector.broadcast %31 : vector<1x128xf32> to vector<16x128xf32>
    %33 = arith.addf %30, %32 : vector<16x128xf32>
    %c0_16 = arith.constant 0 : index
    %c0_17 = arith.constant 0 : index
    %34 = vector.load %arg6[%c0_16, %c0_17] : memref<128x128xf32, #tpu.memory_space<vmem>>, vector<128x128xf32>
    %cst_18 = arith.constant dense<0.000000e+00> : vector<16x128xf32>
    %35 = tpu.matmul %33, %34, %cst_18 {dimension_numbers = #tpu.dot_dimension_numbers<[1], [0], [0], [1], [0, 0, 1, 1], [], []>} : vector<16x128xf32>, vector<128x128xf32>, vector<16x128xf32> -> vector<16x128xf32>
    %c0_19 = arith.constant 0 : index
    %c0_20 = arith.constant 0 : index
    %36 = vector.load %arg7[%c0_19, %c0_20] : memref<16x128xf32, #tpu.memory_space<vmem>>, vector<16x128xf32>
    tpu.vector_store %arg7[%c0_19, %c0_20], %35 {strides = array<i32>} : memref<16x128xf32, #tpu.memory_space<vmem>>, vector<16x128xf32>,
    return
  }
  func.func @transform_0(%arg0: i32) -> (i32, i32) {
    %c0_i32 = arith.constant 0 : i32
    %c0_i32_0 = arith.constant 0 : i32
    return %arg0, %c0_i32 : i32, i32
  }
  func.func @transform_1(%arg0: i32) -> (i32, i32) {
    %c0_i32 = arith.constant 0 : i32
    %c0_i32_0 = arith.constant 0 : i32
    %c0_i32_1 = arith.constant 0 : i32
    return %c0_i32, %c0_i32_0 : i32, i32
  }
  func.func @transform_2(%arg0: i32) -> (i32, i32) {
    %c0_i32 = arith.constant 0 : i32
    %c0_i32_0 = arith.constant 0 : i32
    %c0_i32_1 = arith.constant 0 : i32
    return %c0_i32, %c0_i32_0 : i32, i32
  }
  func.func @transform_3(%arg0: i32) -> (i32, i32) {
    %c0_i32 = arith.constant 0 : i32
    %c0_i32_0 = arith.constant 0 : i32
    %c0_i32_1 = arith.constant 0 : i32
    return %c0_i32, %c0_i32_0 : i32, i32
  }
  func.func @transform_4(%arg0: i32) -> (i32, i32) {
    %c0_i32 = arith.constant 0 : i32
    %c0_i32_0 = arith.constant 0 : i32
    %c0_i32_1 = arith.constant 0 : i32
    return %c0_i32, %c0_i32_0 : i32, i32
  }
  func.func @transform_5(%arg0: i32) -> (i32, i32) {
    %c0_i32 = arith.constant 0 : i32
    %c0_i32_0 = arith.constant 0 : i32
    %c0_i32_1 = arith.constant 0 : i32
    return %c0_i32, %c0_i32_0 : i32, i32
  }
  func.func @transform_6(%arg0: i32) -> (i32, i32) {
    %c0_i32 = arith.constant 0 : i32
    %c0_i32_0 = arith.constant 0 : i32
    return %arg0, %c0_i32 : i32, i32
  }
}

</mosaic_0001>

<llo_original>
// kernel: tpu_custom_call.1
$region0: #{tpu_custom_call.1}
  #allocation0 [shape = 'u32[]', space=smem, size = 0x4, offset = 0x4, fixed_abs, tag = 'smem constant byte address 0x4 - core index']
  #allocation1 [shape = 'u32[144,128]{1,0:T(1,128)}', space=vmem, size = 0x12000, scoped, tag = 'internal scratch']
  %s0 = inlined_call_operand.hbm [shape: f32[16,128], index: 0, kind: input, shape index: {}]
  %s1 = inlined_call_operand.hbm [shape: f32[128,128], index: 1, kind: input, shape index: {}]
  %s2 = inlined_call_operand.vmem [shape: f32[1,128], index: 2, kind: input, shape index: {}]
  %s3 = inlined_call_operand.vmem [shape: f32[1,128], index: 3, kind: input, shape index: {}]
  %s4 = inlined_call_operand.vmem [shape: f32[1,128], index: 4, kind: input, shape index: {}]
  %s5 = inlined_call_operand.hbm [shape: f32[128,128], index: 5, kind: input, shape index: {}]
  %s6 = inlined_call_operand.hbm [shape: f32[16,128], index: 6, kind: output, shape index: {}]
  %s7 = sld [smem:[#allocation0]]
  $region46: #{tpu_custom_call.1} parent=0
    _
  %s9 = ssub.s32 1, %s7
  %s10 = scalar_select 0, %s9, %s7
  $region1: #{tpu_custom_call.1} parent=0
    #allocation2 [shape = 'u8[8192]{0}', space=vmem, size = 0x2000, scoped, tag = 'input window, operand 0, single buffered']
    #allocation3 [shape = 's32[1]{0}', space=sflag, size = 0x4, scoped, tag = 'scoped memory for tpu_custom_call.1']
    #allocation4 [shape = 's32[1]{0}', space=sflag, size = 0x4, scoped, tag = 'scoped memory for tpu_custom_call.1']
    #allocation5 [shape = 'u8[65536]{0}', space=vmem, size = 0x10000, scoped, tag = 'input window, operand 1, single buffered']
    #allocation6 [shape = 's32[1]{0}', space=sflag, size = 0x4, scoped, tag = 'scoped memory for tpu_custom_call.1']
    #allocation7 [shape = 'u8[65536]{0}', space=vmem, size = 0x10000, scoped, tag = 'input window, operand 5, single buffered']
    #allocation8 [shape = 'u8[8192]{0}', space=vmem, size = 0x2000, scoped, tag = 'output window, operand 0, single buffered']
    %11 = vsyncpa [#allocation3], 0
    %12 = vsyncpa [#allocation6], 0
    %13 = vsyncpa [#allocation4], 0
    // Predicated region
    $region2: #{tpu_custom_call.1} parent=1 // pred_check
      _
    $region3: #{tpu_custom_call.1} parent=1 // pred_check_branch
      %15 = sbr.rel (0) target = $region5
    $region4: #{tpu_custom_call.1} parent=1 // pred_region
      %s17 = ssub.s32 256, 256
      %18 = vsyncadd [#allocation3], %s17
      %s19 = sshll.u32 [#allocation2], 4
      %s20 = int_to_ptr.vmem [resolvable:$true] %s19
      %25 = dma.hbm_to_vmem [thread:$0]  %s0, 256, %s20, [#allocation3], 128, 128, 8
    $region5: #{tpu_custom_call.1} parent=1 // pred_fallthru
      _
    // Predicated region
    $region6: #{tpu_custom_call.1} parent=1 // pred_check
      _
    $region7: #{tpu_custom_call.1} parent=1 // pred_check_branch
      %27 = sbr.rel (0) target = $region9
    $region8: #{tpu_custom_call.1} parent=1 // pred_region
      %s29 = ssub.s32 2048, 2048
      %30 = vsyncadd [#allocation6], %s29
      %s31 = sshll.u32 [#allocation5], 4
      %s32 = int_to_ptr.vmem [resolvable:$true] %s31
      %37 = dma.hbm_to_vmem [thread:$0]  %s1, 2048, %s32, [#allocation6], 128, 128, 8
    $region9: #{tpu_custom_call.1} parent=1 // pred_fallthru
      _
    // Predicated region
    $region10: #{tpu_custom_call.1} parent=1 // pred_check
      _
    $region11: #{tpu_custom_call.1} parent=1 // pred_check_branch
      %39 = sbr.rel (0) target = $region13
    $region12: #{tpu_custom_call.1} parent=1 // pred_region
      _
    $region13: #{tpu_custom_call.1} parent=1 // pred_fallthru
      _
    // Predicated region
    $region14: #{tpu_custom_call.1} parent=1 // pred_check
      _
    $region15: #{tpu_custom_call.1} parent=1 // pred_check_branch
      %41 = sbr.rel (0) target = $region17
    $region16: #{tpu_custom_call.1} parent=1 // pred_region
      _
    $region17: #{tpu_custom_call.1} parent=1 // pred_fallthru
      _
    // Predicated region
    $region18: #{tpu_custom_call.1} parent=1 // pred_check
      _
    $region19: #{tpu_custom_call.1} parent=1 // pred_check_branch
      %43 = sbr.rel (0) target = $region21
    $region20: #{tpu_custom_call.1} parent=1 // pred_region
      _
    $region21: #{tpu_custom_call.1} parent=1 // pred_fallthru
      _
    // Predicated region
    $region22: #{tpu_custom_call.1} parent=1 // pred_check
      _
    $region23: #{tpu_custom_call.1} parent=1 // pred_check_branch
      %45 = sbr.rel (0) target = $region25
    $region24: #{tpu_custom_call.1} parent=1 // pred_region
      %s47 = ssub.s32 2048, 2048
      %48 = vsyncadd [#allocation6], %s47
      %s49 = sshll.u32 [#allocation7], 4
      %s50 = int_to_ptr.vmem [resolvable:$true] %s49
      %55 = dma.hbm_to_vmem [thread:$0]  %s5, 2048, %s50, [#allocation6], 128, 128, 8
    $region25: #{tpu_custom_call.1} parent=1 // pred_fallthru
      _
    // Predicated region
    $region26: #{tpu_custom_call.1} parent=1 // pred_check
      _
    $region27: #{tpu_custom_call.1} parent=1 // pred_check_branch
      %57 = sbr.rel (0) target = $region29
    $region28: #{tpu_custom_call.1} parent=1 // pred_region
      %58 = dma.done [#allocation3], 256
    $region29: #{tpu_custom_call.1} parent=1 // pred_fallthru
      _
    // Predicated region
    $region30: #{tpu_custom_call.1} parent=1 // pred_check
      _
    $region31: #{tpu_custom_call.1} parent=1 // pred_check_branch
      %60 = sbr.rel (0) target = $region33
    $region32: #{tpu_custom_call.1} parent=1 // pred_region
      %61 = dma.done [#allocation6], 2048
    $region33: #{tpu_custom_call.1} parent=1 // pred_fallthru
      _
    // Predicated region
    $region34: #{tpu_custom_call.1} parent=1 // pred_check
      _
    $region35: #{tpu_custom_call.1} parent=1 // pred_check_branch
      %63 = sbr.rel (0) target = $region37
    $region36: #{tpu_custom_call.1} parent=1 // pred_region
      %64 = dma.done [#allocation6], 2048
    $region37: #{tpu_custom_call.1} parent=1 // pred_fallthru
      _
    %v65 = vld [vmem:[#allocation2] sm:$0xff]
    %v66 = vld [vmem:[#allocation2 + $0x8] sm:$0xff]
    %v67 = vld [vmem:[#allocation5] sm:$0xff]
    %v68 = vld [vmem:[#allocation5 + $0x8] sm:$0xff]
    %v69 = vld [vmem:[#allocation5 + $0x10] sm:$0xff]
    %v70 = vld [vmem:[#allocation5 + $0x18] sm:$0xff]
    %v71 = vld [vmem:[#allocation5 + $0x20] sm:$0xff]
    %v72 = vld [vmem:[#allocation5 + $0x28] sm:$0xff]
    %v73 = vld [vmem:[#allocation5 + $0x30] sm:$0xff]
    %v74 = vld [vmem:[#allocation5 + $0x38] sm:$0xff]
    %v75 = vld [vmem:[#allocation5 + $0x40] sm:$0xff]
    %v76 = vld [vmem:[#allocation5 + $0x48] sm:$0xff]
    %v77 = vld [vmem:[#allocation5 + $0x50] sm:$0xff]
    %v78 = vld [vmem:[#allocation5 + $0x58] sm:$0xff]
    %v79 = vld [vmem:[#allocation5 + $0x60] sm:$0xff]
    %v80 = vld [vmem:[#allocation5 + $0x68] sm:$0xff]
    %v81 = vld [vmem:[#allocation5 + $0x70] sm:$0xff]
    %v82 = vld [vmem:[#allocation5 + $0x78] sm:$0xff]
    %v83 = vld [vmem:[%s2] sm:$0x1]
    %v85 = vlaneseq
    %v86 = vshrl.u32 %v85, 7
    %v87 = vsub.s32 0, %v86
    %v88 = vrot.slane %v83, %v87
    %90 = vmatprep.subr.mxu0 0.0
    %91 = vmatpush1.msra.mxu0 %v67
    %92 = vmatprep.subr.mxu0 0.0
    %93 = vmatpush1.msra.mxu0 %v68
    %94 = vmatprep.subr.mxu0 0.0
    %95 = vmatpush1.msra.mxu0 %v69
    %96 = vmatprep.subr.mxu0 0.0
    %97 = vmatpush1.msra.mxu0 %v70
    %98 = vmatprep.subr.mxu0 0.0
    %99 = vmatpush1.msra.mxu0 %v71
    %100 = vmatprep.subr.mxu0 0.0
    %101 = vmatpush1.msra.mxu0 %v72
    %102 = vmatprep.subr.mxu0 0.0
    %103 = vmatpush1.msra.mxu0 %v73
    %104 = vmatprep.subr.mxu0 0.0
    %105 = vmatpush1.msra.mxu0 %v74
    %106 = vmatprep.subr.mxu0 0.0
    %107 = vmatpush1.msra.mxu0 %v75
    %108 = vmatprep.subr.mxu0 0.0
    %109 = vmatpush1.msra.mxu0 %v76
    %110 = vmatprep.subr.mxu0 0.0
    %111 = vmatpush1.msra.mxu0 %v77
    %112 = vmatprep.subr.mxu0 0.0
    %113 = vmatpush1.msra.mxu0 %v78
    %114 = vmatprep.subr.mxu0 0.0
    %115 = vmatpush1.msra.mxu0 %v79
    %116 = vmatprep.subr.mxu0 0.0
    %117 = vmatpush1.msra.mxu0 %v80
    %118 = vmatprep.subr.mxu0 0.0
    %119 = vmatpush1.msra.mxu0 %v81
    %120 = vmatprep.subr.mxu0 0.0
    %121 = vmatpush1.msra.mxu0 %v82
    %122 = vmatprep.subr.mxu0 0.0
    %123 = vmatpush1.msra.mxu0 0.0
    %124 = vmatprep.subr.mxu0 0.0
    %125 = vmatpush1.msra.mxu0 0.0
    %126 = vmatprep.subr.mxu0 0.0
    %127 = vmatpush1.msra.mxu0 0.0
    %128 = vmatprep.subr.mxu0 0.0
    %129 = vmatpush1.msra.mxu0 0.0
    %130 = vmatprep.subr.mxu0 0.0
    %131 = vmatpush1.msra.mxu0 0.0
    %132 = vmatprep.subr.mxu0 0.0
    %133 = vmatpush1.msra.mxu0 0.0
    %134 = vmatprep.subr.mxu0 0.0
    %135 = vmatpush1.msra.mxu0 0.0
    %136 = vmatprep.subr.mxu0 0.0
    %137 = vmatpush1.msra.mxu0 0.0
    %138 = vmatprep.subr.mxu0 0.0
    %139 = vmatpush1.msra.mxu0 0.0
    %140 = vmatprep.subr.mxu0 0.0
    %141 = vmatpush1.msra.mxu0 0.0
    %142 = vmatprep.subr.mxu0 0.0
    %143 = vmatpush1.msra.mxu0 0.0
    %144 = vmatprep.subr.mxu0 0.0
    %145 = vmatpush1.msra.mxu0 0.0
    %146 = vmatprep.subr.mxu0 0.0
    %147 = vmatpush1.msra.mxu0 0.0
    %148 = vmatprep.subr.mxu0 0.0
    %149 = vmatpush1.msra.mxu0 0.0
    %150 = vmatprep.subr.mxu0 0.0
    %151 = vmatpush1.msra.mxu0 0.0
    %152 = vmatprep.subr.mxu0 0.0
    %153 = vmatpush1.msra.mxu0 0.0
    %154 = vmatprep.mubr.f32.mxu0 0.0
    %155 = vmatmul.mubr.f32.gmra.mrb[0].mxu0 %v65
    %v156 = vpop.f32.mrb[0].mxu0
    %v157 = vadd.f32 %v88, %v156
    %v158 = vpop.f32.mrb[0].mxu0
    %159 = vmatprep.mubr.f32.mxu0 0.0
    %160 = vmatmul.mubr.f32.gmra.mrb[0].mxu0 %v66
    %v161 = vpop.f32.mrb[0].mxu0
    %v162 = vadd.f32 %v88, %v161
    %v163 = vpop.f32.mrb[0].mxu0
    %164 = vdwg.mxu0
    %v165 = vmax.f32 %v157, 0.0
    %v166 = vmax.f32 %v162, 0.0
    %167 = vadd.xlane.f32.xlu0 %v165
    %v168 = vpop.xlane.xlu0 %167
    %169 = vadd.xlane.f32.xlu0 %v166
    %v170 = vpop.xlane.xlu0 %169
    %v171 = vmul.f32 %v165, %v165
    %v172 = vmul.f32 %v166, %v166
    %173 = vadd.xlane.f32.xlu0 %v171
    %v174 = vpop.xlane.xlu0 %173
    %175 = vadd.xlane.f32.xlu0 %v172
    %v176 = vpop.xlane.xlu0 %175
    %v177 = vmul.f32 %v168, 0.015625
    %v178 = vmul.f32 %v170, 0.015625
    %v179 = vmul.f32 %v174, 0.015625
    %v180 = vmul.f32 %v176, 0.015625
    %v181 = vmul.f32 %v177, %v177
    %v182 = vmul.f32 %v178, %v178
    %v183 = vsub.f32 %v179, %v181
    %v184 = vsub.f32 %v180, %v182
    %v185 = vmax.f32 %v183, 0.0
    %v186 = vmax.f32 %v184, 0.0
    %v187 = vadd.f32 %v185, 1e-12
    %v188 = vadd.f32 %v186, 1e-12
    %v189 = vrsqrt.pop %v187
    %v190 = vrsqrt.pop %v188
    %v191 = vld [vmem:[%s3] sm:$0x1]
    %v193 = vlaneseq
    %v194 = vshrl.u32 %v193, 7
    %v195 = vsub.s32 0, %v194
    %v196 = vrot.slane %v191, %v195
    %v198 = vmul.f32 %v189, %v196
    %v199 = vmul.f32 %v190, %v196
    %v200 = vsub.f32 %v165, %v177
    %v201 = vsub.f32 %v166, %v178
    %v202 = vmul.f32 %v200, %v198
    %v203 = vmul.f32 %v201, %v199
    %v204 = vld [vmem:[%s4] sm:$0x1]
    %v206 = vlaneseq
    %v207 = vshrl.u32 %v206, 7
    %v208 = vsub.s32 0, %v207
    %v209 = vrot.slane %v204, %v208
    %v211 = vadd.f32 %v202, %v209
    %v212 = vadd.f32 %v203, %v209
    %v213 = vld [vmem:[#allocation7] sm:$0xff]
    %v214 = vld [vmem:[#allocation7 + $0x8] sm:$0xff]
    %v215 = vld [vmem:[#allocation7 + $0x10] sm:$0xff]
    %v216 = vld [vmem:[#allocation7 + $0x18] sm:$0xff]
    %v217 = vld [vmem:[#allocation7 + $0x20] sm:$0xff]
    %v218 = vld [vmem:[#allocation7 + $0x28] sm:$0xff]
    %v219 = vld [vmem:[#allocation7 + $0x30] sm:$0xff]
    %v220 = vld [vmem:[#allocation7 + $0x38] sm:$0xff]
    %v221 = vld [vmem:[#allocation7 + $0x40] sm:$0xff]
    %v222 = vld [vmem:[#allocation7 + $0x48] sm:$0xff]
    %v223 = vld [vmem:[#allocation7 + $0x50] sm:$0xff]
    %v224 = vld [vmem:[#allocation7 + $0x58] sm:$0xff]
    %v225 = vld [vmem:[#allocation7 + $0x60] sm:$0xff]
    %v226 = vld [vmem:[#allocation7 + $0x68] sm:$0xff]
    %v227 = vld [vmem:[#allocation7 + $0x70] sm:$0xff]
    %v228 = vld [vmem:[#allocation7 + $0x78] sm:$0xff]
    %229 = vmatprep.subr.mxu0 0.0
    %230 = vmatpush1.msra.mxu0 %v213
    %231 = vmatprep.subr.mxu0 0.0
    %232 = vmatpush1.msra.mxu0 %v214
    %233 = vmatprep.subr.mxu0 0.0
    %234 = vmatpush1.msra.mxu0 %v215
    %235 = vmatprep.subr.mxu0 0.0
    %236 = vmatpush1.msra.mxu0 %v216
    %237 = vmatprep.subr.mxu0 0.0
    %238 = vmatpush1.msra.mxu0 %v217
    %239 = vmatprep.subr.mxu0 0.0
    %240 = vmatpush1.msra.mxu0 %v218
    %241 = vmatprep.subr.mxu0 0.0
    %242 = vmatpush1.msra.mxu0 %v219
    %243 = vmatprep.subr.mxu0 0.0
    %244 = vmatpush1.msra.mxu0 %v220
    %245 = vmatprep.subr.mxu0 0.0
    %246 = vmatpush1.msra.mxu0 %v221
    %247 = vmatprep.subr.mxu0 0.0
    %248 = vmatpush1.msra.mxu0 %v222
    %249 = vmatprep.subr.mxu0 0.0
    %250 = vmatpush1.msra.mxu0 %v223
    %251 = vmatprep.subr.mxu0 0.0
    %252 = vmatpush1.msra.mxu0 %v224
    %253 = vmatprep.subr.mxu0 0.0
    %254 = vmatpush1.msra.mxu0 %v225
    %255 = vmatprep.subr.mxu0 0.0
    %256 = vmatpush1.msra.mxu0 %v226
    %257 = vmatprep.subr.mxu0 0.0
    %258 = vmatpush1.msra.mxu0 %v227
    %259 = vmatprep.subr.mxu0 0.0
    %260 = vmatpush1.msra.mxu0 %v228
    %261 = vmatprep.subr.mxu0 0.0
    %262 = vmatpush1.msra.mxu0 0.0
    %263 = vmatprep.subr.mxu0 0.0
    %264 = vmatpush1.msra.mxu0 0.0
    %265 = vmatprep.subr.mxu0 0.0
    %266 = vmatpush1.msra.mxu0 0.0
    %267 = vmatprep.subr.mxu0 0.0
    %268 = vmatpush1.msra.mxu0 0.0
    %269 = vmatprep.subr.mxu0 0.0
    %270 = vmatpush1.msra.mxu0 0.0
    %271 = vmatprep.subr.mxu0 0.0
    %272 = vmatpush1.msra.mxu0 0.0
    %273 = vmatprep.subr.mxu0 0.0
    %274 = vmatpush1.msra.mxu0 0.0
    %275 = vmatprep.subr.mxu0 0.0
    %276 = vmatpush1.msra.mxu0 0.0
    %277 = vmatprep.subr.mxu0 0.0
    %278 = vmatpush1.msra.mxu0 0.0
    %279 = vmatprep.subr.mxu0 0.0
    %280 = vmatpush1.msra.mxu0 0.0
    %281 = vmatprep.subr.mxu0 0.0
    %282 = vmatpush1.msra.mxu0 0.0
    %283 = vmatprep.subr.mxu0 0.0
    %284 = vmatpush1.msra.mxu0 0.0
    %285 = vmatprep.subr.mxu0 0.0
    %286 = vmatpush1.msra.mxu0 0.0
    %287 = vmatprep.subr.mxu0 0.0
    %288 = vmatpush1.msra.mxu0 0.0
    %289 = vmatprep.subr.mxu0 0.0
    %290 = vmatpush1.msra.mxu0 0.0
    %291 = vmatprep.subr.mxu0 0.0
    %292 = vmatpush1.msra.mxu0 0.0
    %293 = vmatprep.mubr.f32.mxu0 0.0
    %294 = vmatmul.mubr.f32.gmra.mrb[0].mxu0 %v211
    %v295 = vpop.f32.mrb[0].mxu0
    %v296 = vadd.f32 0.0, %v295
    %v297 = vpop.f32.mrb[0].mxu0
    %298 = vmatprep.mubr.f32.mxu0 0.0
    %299 = vmatmul.mubr.f32.gmra.mrb[0].mxu0 %v212
    %v300 = vpop.f32.mrb[0].mxu0
    %v301 = vadd.f32 0.0, %v300
    %v302 = vpop.f32.mrb[0].mxu0
    %303 = vdwg.mxu0
    %304 = vst [vmem:[#allocation8] sm:$0xff] %v296
    %305 = vst [vmem:[#allocation8 + $0x8] sm:$0xff] %v301
    // Predicated region
    $region38: #{tpu_custom_call.1} parent=1 // pred_check
      _
    $region39: #{tpu_custom_call.1} parent=1 // pred_check_branch
      %307 = sbr.rel (0) target = $region41
    $region40: #{tpu_custom_call.1} parent=1 // pred_region
      %s309 = ssub.s32 256, 256
      %310 = vsyncadd [#allocation4], %s309
      %s311 = sshll.u32 [#allocation8], 4
      %s312 = int_to_ptr.vmem [resolvable:$true] %s311
      %317 = dma.vmem_to_hbm [thread:$0]  %s312, 256, %s6, [#allocation4], 128, 128, 8
    $region41: #{tpu_custom_call.1} parent=1 // pred_fallthru
      _
    // Predicated region
    $region42: #{tpu_custom_call.1} parent=1 // pred_check
      _
    $region43: #{tpu_custom_call.1} parent=1 // pred_check_branch
      %319 = sbr.rel (0) target = $region45
    $region44: #{tpu_custom_call.1} parent=1 // pred_region
      %320 = dma.done [#allocation4], 256
    $region45: #{tpu_custom_call.1} parent=1 // pred_fallthru
      _
    %321 = vsyncpa [#allocation3], 1
    %322 = vsyncpa [#allocation6], 1
    %323 = vsyncpa [#allocation4], 1

// kernel: tpu_custom_call.1
$region0: #{tpu_custom_call.1}
  #allocation0 [shape = 'u32[]', space=smem, size = 0x4, offset = 0x4, fixed_abs, tag = 'smem constant byte address 0x4 - core index']
  #allocation1 [shape = 'u32[144,128]{1,0:T(1,128)}', space=vmem, size = 0x12000, scoped, tag = 'internal scratch']
  %s0 = inlined_call_operand.hbm [shape: f32[16,128], index: 0, kind: input, shape index: {}]
  %s1 = inlined_call_operand.hbm [shape: f32[128,128], index: 1, kind: input, shape index: {}]
  %s2 = inlined_call_operand.vmem [shape: f32[1,128], index: 2, kind: input, shape index: {}]
  %s3 = inlined_call_operand.vmem [shape: f32[1,128], index: 3, kind: input, shape index: {}]
  %s4 = inlined_call_operand.vmem [shape: f32[1,128], index: 4, kind: input, shape index: {}]
  %s5 = inlined_call_operand.hbm [shape: f32[128,128], index: 5, kind: input, shape index: {}]
  %s6 = inlined_call_operand.hbm [shape: f32[16,128], index: 6, kind: output, shape index: {}]
  %s7 = sld [smem:[#allocation0]]
  $region46: #{tpu_custom_call.1} parent=0
    _
  %s9 = ssub.s32 1, %s7
  %s10 = scalar_select 0, %s9, %s7
  $region1: #{tpu_custom_call.1} parent=0
    #allocation2 [shape = 'u8[8192]{0}', space=vmem, size = 0x2000, scoped, tag = 'input window, operand 0, single buffered']
    #allocation3 [shape = 's32[1]{0}', space=sflag, size = 0x4, scoped, tag = 'scoped memory for tpu_custom_call.1']
    #allocation4 [shape = 's32[1]{0}', space=sflag, size = 0x4, scoped, tag = 'scoped memory for tpu_custom_call.1']
    #allocation5 [shape = 'u8[65536]{0}', space=vmem, size = 0x10000, scoped, tag = 'input window, operand 1, single buffered']
    #allocation6 [shape = 's32[1]{0}', space=sflag, size = 0x4, scoped, tag = 'scoped memory for tpu_custom_call.1']
    #allocation7 [shape = 'u8[65536]{0}', space=vmem, size = 0x10000, scoped, tag = 'input window, operand 5, single buffered']
    #allocation8 [shape = 'u8[8192]{0}', space=vmem, size = 0x2000, scoped, tag = 'output window, operand 0, single buffered']
    %11 = vsyncpa [#allocation3], 0
    %12 = vsyncpa [#allocation6], 0
    %13 = vsyncpa [#allocation4], 0
    // Predicated region
    $region2: #{tpu_custom_call.1} parent=1 // pred_check
      _
    $region3: #{tpu_custom_call.1} parent=1 // pred_check_branch
      %15 = sbr.rel (0) target = $region5
    $region4: #{tpu_custom_call.1} parent=1 // pred_region
      %s17 = ssub.s32 256, 256
      %18 = vsyncadd [#allocation3], %s17
      %s19 = sshll.u32 [#allocation2], 4
      %s20 = int_to_ptr.vmem [resolvable:$true] %s19
      %25 = dma.hbm_to_vmem [thread:$0]  %s0, 256, %s20, [#allocation3], 128, 128, 8
    $region5: #{tpu_custom_call.1} parent=1 // pred_fallthru
      _
    // Predicated region
    $region6: #{tpu_custom_call.1} parent=1 // pred_check
      _
    $region7: #{tpu_custom_call.1} parent=1 // pred_check_branch
      %27 = sbr.rel (0) target = $region9
    $region8: #{tpu_custom_call.1} parent=1 // pred_region
      %s29 = ssub.s32 2048, 2048
      %30 = vsyncadd [#allocation6], %s29
      %s31 = sshll.u32 [#allocation5], 4
      %s32 = int_to_ptr.vmem [resolvable:$true] %s31
      %37 = dma.hbm_to_vmem [thread:$0]  %s1, 2048, %s32, [#allocation6], 128, 128, 8
    $region9: #{tpu_custom_call.1} parent=1 // pred_fallthru
      _
    // Predicated region
    $region10: #{tpu_custom_call.1} parent=1 // pred_check
      _
    $region11: #{tpu_custom_call.1} parent=1 // pred_check_branch
      %39 = sbr.rel (0) target = $region13
    $region12: #{tpu_custom_call.1} parent=1 // pred_region
      _
    $region13: #{tpu_custom_call.1} parent=1 // pred_fallthru
      _
    // Predicated region
    $region14: #{tpu_custom_call.1} parent=1 // pred_check
      _
    $region15: #{tpu_custom_call.1} parent=1 // pred_check_branch
      %41 = sbr.rel (0) target = $region17
    $region16: #{tpu_custom_call.1} parent=1 // pred_region
      _
    $region17: #{tpu_custom_call.1} parent=1 // pred_fallthru
      _
    // Predicated region
    $region18: #{tpu_custom_call.1} parent=1 // pred_check
      _
    $region19: #{tpu_custom_call.1} parent=1 // pred_check_branch
      %43 = sbr.rel (0) target = $region21
    $region20: #{tpu_custom_call.1} parent=1 // pred_region
      _
    $region21: #{tpu_custom_call.1} parent=1 // pred_fallthru
      _
    // Predicated region
    $region22: #{tpu_custom_call.1} parent=1 // pred_check
      _
    $region23: #{tpu_custom_call.1} parent=1 // pred_check_branch
      %45 = sbr.rel (0) target = $region25
    $region24: #{tpu_custom_call.1} parent=1 // pred_region
      %s47 = ssub.s32 2048, 2048
      %48 = vsyncadd [#allocation6], %s47
      %s49 = sshll.u32 [#allocation7], 4
      %s50 = int_to_ptr.vmem [resolvable:$true] %s49
      %55 = dma.hbm_to_vmem [thread:$0]  %s5, 2048, %s50, [#allocation6], 128, 128, 8
    $region25: #{tpu_custom_call.1} parent=1 // pred_fallthru
      _
    // Predicated region
    $region26: #{tpu_custom_call.1} parent=1 // pred_check
      _
    $region27: #{tpu_custom_call.1} parent=1 // pred_check_branch
      %57 = sbr.rel (0) target = $region29
    $region28: #{tpu_custom_call.1} parent=1 // pred_region
      %58 = dma.done [#allocation3], 256
    $region29: #{tpu_custom_call.1} parent=1 // pred_fallthru
      _
    // Predicated region
    $region30: #{tpu_custom_call.1} parent=1 // pred_check
      _
    $region31: #{tpu_custom_call.1} parent=1 // pred_check_branch
      %60 = sbr.rel (0) target = $region33
    $region32: #{tpu_custom_call.1} parent=1 // pred_region
      %61 = dma.done [#allocation6], 2048
    $region33: #{tpu_custom_call.1} parent=1 // pred_fallthru
      _
    // Predicated region
    $region34: #{tpu_custom_call.1} parent=1 // pred_check
      _
    $region35: #{tpu_custom_call.1} parent=1 // pred_check_branch
      %63 = sbr.rel (0) target = $region37
    $region36: #{tpu_custom_call.1} parent=1 // pred_region
      %64 = dma.done [#allocation6], 2048
    $region37: #{tpu_custom_call.1} parent=1 // pred_fallthru
      _
    %v65 = vld [vmem:[#allocation2] sm:$0xff]
    %v66 = vld [vmem:[#allocation2 + $0x8] sm:$0xff]
    %v67 = vld [vmem:[#allocation5] sm:$0xff]
    %v68 = vld [vmem:[#allocation5 + $0x8] sm:$0xff]
    %v69 = vld [vmem:[#allocation5 + $0x10] sm:$0xff]
    %v70 = vld [vmem:[#allocation5 + $0x18] sm:$0xff]
    %v71 = vld [vmem:[#allocation5 + $0x20] sm:$0xff]
    %v72 = vld [vmem:[#allocation5 + $0x28] sm:$0xff]
    %v73 = vld [vmem:[#allocation5 + $0x30] sm:$0xff]
    %v74 = vld [vmem:[#allocation5 + $0x38] sm:$0xff]
    %v75 = vld [vmem:[#allocation5 + $0x40] sm:$0xff]
    %v76 = vld [vmem:[#allocation5 + $0x48] sm:$0xff]
    %v77 = vld [vmem:[#allocation5 + $0x50] sm:$0xff]
    %v78 = vld [vmem:[#allocation5 + $0x58] sm:$0xff]
    %v79 = vld [vmem:[#allocation5 + $0x60] sm:$0xff]
    %v80 = vld [vmem:[#allocation5 + $0x68] sm:$0xff]
    %v81 = vld [vmem:[#allocation5 + $0x70] sm:$0xff]
    %v82 = vld [vmem:[#allocation5 + $0x78] sm:$0xff]
    %v83 = vld [vmem:[%s2] sm:$0x1]
    %v85 = vlaneseq
    %v86 = vshrl.u32 %v85, 7
    %v87 = vsub.s32 0, %v86
    %v88 = vrot.slane %v83, %v87
    %90 = vmatprep.subr.mxu0 0.0
    %91 = vmatpush1.msra.mxu0 %v67
    %92 = vmatprep.subr.mxu0 0.0
    %93 = vmatpush1.msra.mxu0 %v68
    %94 = vmatprep.subr.mxu0 0.0
    %95 = vmatpush1.msra.mxu0 %v69
    %96 = vmatprep.subr.mxu0 0.0
    %97 = vmatpush1.msra.mxu0 %v70
    %98 = vmatprep.subr.mxu0 0.0
    %99 = vmatpush1.msra.mxu0 %v71
    %100 = vmatprep.subr.mxu0 0.0
    %101 = vmatpush1.msra.mxu0 %v72
    %102 = vmatprep.subr.mxu0 0.0
    %103 = vmatpush1.msra.mxu0 %v73
    %104 = vmatprep.subr.mxu0 0.0
    %105 = vmatpush1.msra.mxu0 %v74
    %106 = vmatprep.subr.mxu0 0.0
    %107 = vmatpush1.msra.mxu0 %v75
    %108 = vmatprep.subr.mxu0 0.0
    %109 = vmatpush1.msra.mxu0 %v76
    %110 = vmatprep.subr.mxu0 0.0
    %111 = vmatpush1.msra.mxu0 %v77
    %112 = vmatprep.subr.mxu0 0.0
    %113 = vmatpush1.msra.mxu0 %v78
    %114 = vmatprep.subr.mxu0 0.0
    %115 = vmatpush1.msra.mxu0 %v79
    %116 = vmatprep.subr.mxu0 0.0
    %117 = vmatpush1.msra.mxu0 %v80
    %118 = vmatprep.subr.mxu0 0.0
    %119 = vmatpush1.msra.mxu0 %v81
    %120 = vmatprep.subr.mxu0 0.0
    %121 = vmatpush1.msra.mxu0 %v82
    %122 = vmatprep.subr.mxu0 0.0
    %123 = vmatpush1.msra.mxu0 0.0
    %124 = vmatprep.subr.mxu0 0.0
    %125 = vmatpush1.msra.mxu0 0.0
    %126 = vmatprep.subr.mxu0 0.0
    %127 = vmatpush1.msra.mxu0 0.0
    %128 = vmatprep.subr.mxu0 0.0
    %129 = vmatpush1.msra.mxu0 0.0
    %130 = vmatprep.subr.mxu0 0.0
    %131 = vmatpush1.msra.mxu0 0.0
    %132 = vmatprep.subr.mxu0 0.0
    %133 = vmatpush1.msra.mxu0 0.0
    %134 = vmatprep.subr.mxu0 0.0
    %135 = vmatpush1.msra.mxu0 0.0
    %136 = vmatprep.subr.mxu0 0.0
    %137 = vmatpush1.msra.mxu0 0.0
    %138 = vmatprep.subr.mxu0 0.0
    %139 = vmatpush1.msra.mxu0 0.0
    %140 = vmatprep.subr.mxu0 0.0
    %141 = vmatpush1.msra.mxu0 0.0
    %142 = vmatprep.subr.mxu0 0.0
    %143 = vmatpush1.msra.mxu0 0.0
    %144 = vmatprep.subr.mxu0 0.0
    %145 = vmatpush1.msra.mxu0 0.0
    %146 = vmatprep.subr.mxu0 0.0
    %147 = vmatpush1.msra.mxu0 0.0
    %148 = vmatprep.subr.mxu0 0.0
    %149 = vmatpush1.msra.mxu0 0.0
    %150 = vmatprep.subr.mxu0 0.0
    %151 = vmatpush1.msra.mxu0 0.0
    %152 = vmatprep.subr.mxu0 0.0
    %153 = vmatpush1.msra.mxu0 0.0
    %154 = vmatprep.mubr.f32.mxu0 0.0
    %155 = vmatmul.mubr.f32.gmra.mrb[0].mxu0 %v65
    %v156 = vpop.f32.mrb[0].mxu0
    %v157 = vadd.f32 %v88, %v156
    %v158 = vpop.f32.mrb[0].mxu0
    %159 = vmatprep.mubr.f32.mxu0 0.0
    %160 = vmatmul.mubr.f32.gmra.mrb[0].mxu0 %v66
    %v161 = vpop.f32.mrb[0].mxu0
    %v162 = vadd.f32 %v88, %v161
    %v163 = vpop.f32.mrb[0].mxu0
    %164 = vdwg.mxu0
    %v165 = vmax.f32 %v157, 0.0
    %v166 = vmax.f32 %v162, 0.0
    %167 = vadd.xlane.f32.xlu0 %v165
    %v168 = vpop.xlane.xlu0 %167
    %169 = vadd.xlane.f32.xlu0 %v166
    %v170 = vpop.xlane.xlu0 %169
    %v171 = vmul.f32 %v165, %v165
    %v172 = vmul.f32 %v166, %v166
    %173 = vadd.xlane.f32.xlu0 %v171
    %v174 = vpop.xlane.xlu0 %173
    %175 = vadd.xlane.f32.xlu0 %v172
    %v176 = vpop.xlane.xlu0 %175
    %v177 = vmul.f32 %v168, 0.015625
    %v178 = vmul.f32 %v170, 0.015625
    %v179 = vmul.f32 %v174, 0.015625
    %v180 = vmul.f32 %v176, 0.015625
    %v181 = vmul.f32 %v177, %v177
    %v182 = vmul.f32 %v178, %v178
    %v183 = vsub.f32 %v179, %v181
    %v184 = vsub.f32 %v180, %v182
    %v185 = vmax.f32 %v183, 0.0
    %v186 = vmax.f32 %v184, 0.0
    %v187 = vadd.f32 %v185, 1e-12
    %v188 = vadd.f32 %v186, 1e-12
    %v189 = vrsqrt.pop %v187
    %v190 = vrsqrt.pop %v188
    %v191 = vld [vmem:[%s3] sm:$0x1]
    %v193 = vlaneseq
    %v194 = vshrl.u32 %v193, 7
    %v195 = vsub.s32 0, %v194
    %v196 = vrot.slane %v191, %v195
    %v198 = vmul.f32 %v189, %v196
    %v199 = vmul.f32 %v190, %v196
    %v200 = vsub.f32 %v165, %v177
    %v201 = vsub.f32 %v166, %v178
    %v202 = vmul.f32 %v200, %v198
    %v203 = vmul.f32 %v201, %v199
    %v204 = vld [vmem:[%s4] sm:$0x1]
    %v206 = vlaneseq
    %v207 = vshrl.u32 %v206, 7
    %v208 = vsub.s32 0, %v207
    %v209 = vrot.slane %v204, %v208
    %v211 = vadd.f32 %v202, %v209
    %v212 = vadd.f32 %v203, %v209
    %v213 = vld [vmem:[#allocation7] sm:$0xff]
    %v214 = vld [vmem:[#allocation7 + $0x8] sm:$0xff]
    %v215 = vld [vmem:[#allocation7 + $0x10] sm:$0xff]
    %v216 = vld [vmem:[#allocation7 + $0x18] sm:$0xff]
    %v217 = vld [vmem:[#allocation7 + $0x20] sm:$0xff]
    %v218 = vld [vmem:[#allocation7 + $0x28] sm:$0xff]
    %v219 = vld [vmem:[#allocation7 + $0x30] sm:$0xff]
    %v220 = vld [vmem:[#allocation7 + $0x38] sm:$0xff]
    %v221 = vld [vmem:[#allocation7 + $0x40] sm:$0xff]
    %v222 = vld [vmem:[#allocation7 + $0x48] sm:$0xff]
    %v223 = vld [vmem:[#allocation7 + $0x50] sm:$0xff]
    %v224 = vld [vmem:[#allocation7 + $0x58] sm:$0xff]
    %v225 = vld [vmem:[#allocation7 + $0x60] sm:$0xff]
    %v226 = vld [vmem:[#allocation7 + $0x68] sm:$0xff]
    %v227 = vld [vmem:[#allocation7 + $0x70] sm:$0xff]
    %v228 = vld [vmem:[#allocation7 + $0x78] sm:$0xff]
    %229 = vmatprep.subr.mxu0 0.0
    %230 = vmatpush1.msra.mxu0 %v213
    %231 = vmatprep.subr.mxu0 0.0
    %232 = vmatpush1.msra.mxu0 %v214
    %233 = vmatprep.subr.mxu0 0.0
    %234 = vmatpush1.msra.mxu0 %v215
    %235 = vmatprep.subr.mxu0 0.0
    %236 = vmatpush1.msra.mxu0 %v216
    %237 = vmatprep.subr.mxu0 0.0
    %238 = vmatpush1.msra.mxu0 %v217
    %239 = vmatprep.subr.mxu0 0.0
    %240 = vmatpush1.msra.mxu0 %v218
    %241 = vmatprep.subr.mxu0 0.0
    %242 = vmatpush1.msra.mxu0 %v219
    %243 = vmatprep.subr.mxu0 0.0
    %244 = vmatpush1.msra.mxu0 %v220
    %245 = vmatprep.subr.mxu0 0.0
    %246 = vmatpush1.msra.mxu0 %v221
    %247 = vmatprep.subr.mxu0 0.0
    %248 = vmatpush1.msra.mxu0 %v222
    %249 = vmatprep.subr.mxu0 0.0
    %250 = vmatpush1.msra.mxu0 %v223
    %251 = vmatprep.subr.mxu0 0.0
    %252 = vmatpush1.msra.mxu0 %v224
    %253 = vmatprep.subr.mxu0 0.0
    %254 = vmatpush1.msra.mxu0 %v225
    %255 = vmatprep.subr.mxu0 0.0
    %256 = vmatpush1.msra.mxu0 %v226
    %257 = vmatprep.subr.mxu0 0.0
    %258 = vmatpush1.msra.mxu0 %v227
    %259 = vmatprep.subr.mxu0 0.0
    %260 = vmatpush1.msra.mxu0 %v228
    %261 = vmatprep.subr.mxu0 0.0
    %262 = vmatpush1.msra.mxu0 0.0
    %263 = vmatprep.subr.mxu0 0.0
    %264 = vmatpush1.msra.mxu0 0.0
    %265 = vmatprep.subr.mxu0 0.0
    %266 = vmatpush1.msra.mxu0 0.0
    %267 = vmatprep.subr.mxu0 0.0
    %268 = vmatpush1.msra.mxu0 0.0
    %269 = vmatprep.subr.mxu0 0.0
    %270 = vmatpush1.msra.mxu0 0.0
    %271 = vmatprep.subr.mxu0 0.0
    %272 = vmatpush1.msra.mxu0 0.0
    %273 = vmatprep.subr.mxu0 0.0
    %274 = vmatpush1.msra.mxu0 0.0
    %275 = vmatprep.subr.mxu0 0.0
    %276 = vmatpush1.msra.mxu0 0.0
    %277 = vmatprep.subr.mxu0 0.0
    %278 = vmatpush1.msra.mxu0 0.0
    %279 = vmatprep.subr.mxu0 0.0
    %280 = vmatpush1.msra.mxu0 0.0
    %281 = vmatprep.subr.mxu0 0.0
    %282 = vmatpush1.msra.mxu0 0.0
    %283 = vmatprep.subr.mxu0 0.0
    %284 = vmatpush1.msra.mxu0 0.0
    %285 = vmatprep.subr.mxu0 0.0
    %286 = vmatpush1.msra.mxu0 0.0
    %287 = vmatprep.subr.mxu0 0.0
    %288 = vmatpush1.msra.mxu0 0.0
    %289 = vmatprep.subr.mxu0 0.0
    %290 = vmatpush1.msra.mxu0 0.0
    %291 = vmatprep.subr.mxu0 0.0
    %292 = vmatpush1.msra.mxu0 0.0
    %293 = vmatprep.mubr.f32.mxu0 0.0
    %294 = vmatmul.mubr.f32.gmra.mrb[0].mxu0 %v211
    %v295 = vpop.f32.mrb[0].mxu0
    %v296 = vadd.f32 0.0, %v295
    %v297 = vpop.f32.mrb[0].mxu0
    %298 = vmatprep.mubr.f32.mxu0 0.0
    %299 = vmatmul.mubr.f32.gmra.mrb[0].mxu0 %v212
    %v300 = vpop.f32.mrb[0].mxu0
    %v301 = vadd.f32 0.0, %v300
    %v302 = vpop.f32.mrb[0].mxu0
    %303 = vdwg.mxu0
    %304 = vst [vmem:[#allocation8] sm:$0xff] %v296
    %305 = vst [vmem:[#allocation8 + $0x8] sm:$0xff] %v301
    // Predicated region
    $region38: #{tpu_custom_call.1} parent=1 // pred_check
      _
    $region39: #{tpu_custom_call.1} parent=1 // pred_check_branch
      %307 = sbr.rel (0) target = $region41
    $region40: #{tpu_custom_call.1} parent=1 // pred_region
      %s309 = ssub.s32 256, 256
      %310 = vsyncadd [#allocation4], %s309
      %s311 = sshll.u32 [#allocation8], 4
      %s312 = int_to_ptr.vmem [resolvable:$true] %s311
      %317 = dma.vmem_to_hbm [thread:$0]  %s312, 256, %s6, [#allocation4], 128, 128, 8
    $region41: #{tpu_custom_call.1} parent=1 // pred_fallthru
      _
    // Predicated region
    $region42: #{tpu_custom_call.1} parent=1 // pred_check
      _
    $region43: #{tpu_custom_call.1} parent=1 // pred_check_branch
      %319 = sbr.rel (0) target = $region45
    $region44: #{tpu_custom_call.1} parent=1 // pred_region
      %320 = dma.done [#allocation4], 256
    $region45: #{tpu_custom_call.1} parent=1 // pred_fallthru
      _
    %321 = vsyncpa [#allocation3], 1
    %322 = vsyncpa [#allocation6], 1
    %323 = vsyncpa [#allocation4], 1

</llo_original>
